<compile_context>
chip_gen: v7x
topology: tpu7x:2x2x1
jax: 0.10.0
libtpu: 0.0.40
codegen_flags: <defaults>
</compile_context>

<pallas_src>
import functools

import jax
import jax.numpy as jnp
from jax import lax
from jax.experimental import pallas as pl
from jax.experimental.pallas import tpu as pltpu


def _listmle_kernel(x_ref, o_ref, *, n_lists, n_items):
    """x_ref: (Lp, Bt) sorted preds (scan axis on sublanes, batch on lanes).

    o_ref: (1, 8, 128) per-block partial sum of per-list losses (broadcast).
    n_lists: true batch size B (for lane masking).
    n_items: true list length L (for row masking; rows >= L are padding).
    """
    Lp, Bt = x_ref.shape
    x = x_ref[...].astype(jnp.float32)

    row = lax.broadcasted_iota(jnp.int32, (Lp, Bt), 0)   # scan position
    col = pl.program_id(0) * Bt + lax.broadcasted_iota(jnp.int32, (Lp, Bt), 1)

    # Hillis-Steele inclusive logcumsumexp scan along axis 0 (sublanes).
    # Shift via pltpu.roll (XLU sublane rotate); wrap-around rows are masked
    # to -inf, the identity of logaddexp.
    lcse = x
    d = 1
    while d < n_items:
        shifted = pltpu.roll(lcse, shift=d, axis=0)        # shifted[i] = lcse[i-d]
        shifted = jnp.where(row >= d, shifted, -jnp.inf)
        hi = jnp.maximum(lcse, shifted)
        lo = jnp.minimum(lcse, shifted)
        # One-exp logaddexp: exp(lo-hi) in [0,1]; -inf identity -> log1p(0)=0.
        lcse = hi + jnp.log1p(jnp.exp(lo - hi))
        d *= 2

    # loss contribution per element = lcse - x; mask padded rows/lanes.
    valid = (row < n_items) & (col < n_lists)
    partial = jnp.sum(jnp.where(valid, lcse - x, 0.0))
    o_ref[...] = jnp.full(o_ref.shape, partial, dtype=jnp.float32)


def _pick_b_tile(batch):
    """Batch-lane tile: large, 128-aligned blocks; tail lanes masked in-kernel."""
    if batch <= 512:
        return max(128, -(-batch // 128) * 128)          # one lane-dense block
    for cand in (8192, 4096, 2048, 1024, 512):
        if batch % cand == 0:
            return cand
    for cand in (8192, 4096, 2048, 1024):
        if batch > cand:
            return cand
    return 512


def listwise_loss(y_pred, y_true):
    """Pallas-backed ListMLE loss. y_pred, y_true: (B, L)."""
    B, L = y_pred.shape

    # TODO(synk): the sort itself has no clean Pallas TPU equivalent; it stays
    # as one fused XLA key/value co-sort (descending by y_true).
    _, x_sorted = lax.sort((-y_true, y_pred), num_keys=1)   # (B, L), native dtype

    # Scan axis on sublanes, batch on lanes.
    x_t = x_sorted.T                                        # (L, B)

    Lp = -(-L // 8) * 8                                     # sublane-align the scan axis
    b_tile = _pick_b_tile(B)
    Bp = -(-B // b_tile) * b_tile                           # lane-pad the batch axis
    if Lp != L or Bp != B:
        x_t = jnp.pad(x_t, ((0, Lp - L), (0, Bp - B)))

    grid = (Bp // b_tile,)
    num_blocks = grid[0]

    partials = pl.pallas_call(
        functools.partial(_listmle_kernel, n_lists=B, n_items=L),
        out_shape=jax.ShapeDtypeStruct((num_blocks, 8, 128), jnp.float32),
        grid_spec=pltpu.PrefetchScalarGridSpec(
            num_scalar_prefetch=0,
            grid=grid,
            in_specs=[pl.BlockSpec((Lp, b_tile), lambda b: (0, b))],
            out_specs=pl.BlockSpec((1, 8, 128), lambda b: (b, 0, 0)),
        ),
        compiler_params=pltpu.CompilerParams(
            # Per-block outputs -> no shared state -> megacore can split the grid.
            dimension_semantics=("parallel",),
            vmem_limit_bytes=32 * 1024 * 1024,
        ),
    )(x_t)

    # Tiny finalization in XLA: mean over lists.
    return jnp.sum(partials[:, 0, 0]) / jnp.float32(B)


def _listwise_loss_ref(y_pred, y_true):
    """Pure-JAX reference mirroring the PyTorch forward."""
    order = jnp.argsort(-y_true, axis=-1)
    x = jnp.take_along_axis(y_pred, order, axis=-1)
    lcse = lax.cumlogsumexp(x, axis=1)          # positive axis (XLA requirement)
    loss = -jnp.sum(x - lcse, axis=-1)
    return jnp.mean(loss)


if __name__ == "__main__":
    key = jax.random.PRNGKey(0)
    k1, k2, k3, k4, k5, k6 = jax.random.split(key, 6)

    # Small shape matching the module's typical use: 8 lists of 16 items.
    B1, L1 = 8, 16
    yp1 = jax.random.normal(k1, (B1, L1), dtype=jnp.float32)
    yt1 = jax.random.normal(k2, (B1, L1), dtype=jnp.float32)
    out1 = jax.block_until_ready(listwise_loss(yp1, yt1))
    ref1 = jax.block_until_ready(_listwise_loss_ref(yp1, yt1))
    assert jnp.allclose(out1, ref1, rtol=1e-4, atol=1e-4), (out1, ref1)

    # Non-power-of-two list length (row padding 20 -> 24) + single big block.
    B2, L2 = 384, 20
    yp2 = jax.random.normal(k3, (B2, L2), dtype=jnp.float32)
    yt2 = jax.random.normal(k4, (B2, L2), dtype=jnp.float32)
    out2 = jax.block_until_ready(listwise_loss(yp2, yt2))
    ref2 = jax.block_until_ready(_listwise_loss_ref(yp2, yt2))
    assert jnp.allclose(out2, ref2, rtol=1e-4, atol=1e-4), (out2, ref2)

    # Non-divisible batch: grid of 2 parallel blocks + masked tail lanes.
    B3, L3 = 1000, 12
    yp3 = jax.random.normal(k5, (B3, L3), dtype=jnp.float32)
    yt3 = jax.random.normal(k6, (B3, L3), dtype=jnp.float32)
    out3 = jax.block_until_ready(listwise_loss(yp3, yt3))
    ref3 = jax.block_until_ready(_listwise_loss_ref(yp3, yt3))
    assert jnp.allclose(out3, ref3, rtol=1e-4, atol=1e-4), (out3, ref3)

    print("KERNEL_OK")
</pallas_src>

<mosaic_0001>
module attributes {stable_mosaic.version = 11 : i64} {
  func.func @_listmle_kernel(%arg0: i32, %arg1: memref<16x128xf32, #tpu.memory_space<vmem>>, %arg2: memref<1x8x128xf32, #tpu.memory_space<vmem>>) attributes {dimension_semantics = [#tpu.dimension_semantics<parallel>], iteration_bounds = array<i64: 1>, scalar_prefetch = 0 : i64, scratch_operands = 0 : i64, tpu.core_type = #tpu.core_type<tc>, window_params = [{transform_indices = @transform_0, window_bounds = array<i64: 16, 128>}, {transform_indices = @transform_1, window_bounds = array<i64: 1, 8, 128>}]} {
    %c0 = arith.constant 0 : index
    %c0_0 = arith.constant 0 : index
    %0 = vector.load %arg1[%c0, %c0_0] : memref<16x128xf32, #tpu.memory_space<vmem>>, vector<16x128xf32>
    %1 = tpu.iota {dimensions = array<i32: 0>} : vector<16x128xi32>
    %c128_i32 = arith.constant 128 : i32
    %2 = arith.muli %arg0, %c128_i32 : i32
    %3 = tpu.iota {dimensions = array<i32: 1>} : vector<16x128xi32>
    %4 = vector.broadcast %2 : i32 to vector<16x128xi32>
    %5 = arith.addi %4, %3 : vector<16x128xi32>
    %c1_i32 = arith.constant 1 : i32
    %6 = tpu.dynamic_rotate %0 by %c1_i32 dim 0 : vector<16x128xf32>, i32 -> vector<16x128xf32>
    %c1_i32_1 = arith.constant 1 : i32
    %7 = vector.broadcast %c1_i32_1 : i32 to vector<16x128xi32>
    %8 = arith.cmpi sge, %1, %7 : vector<16x128xi32>
    %cst = arith.constant 0xFF800000 : f32
    %9 = vector.broadcast %cst : f32 to vector<16x128xf32>
    %10 = arith.select %8, %6, %9 : vector<16x128xi1>, vector<16x128xf32>
    %11 = arith.maximumf %0, %10 : vector<16x128xf32>
    %12 = arith.minimumf %0, %10 : vector<16x128xf32>
    %13 = arith.subf %12, %11 : vector<16x128xf32>
    %14 = math.exp %13 : vector<16x128xf32>
    %15 = math.log1p %14 : vector<16x128xf32>
    %16 = arith.addf %11, %15 : vector<16x128xf32>
    %c2_i32 = arith.constant 2 : i32
    %17 = tpu.dynamic_rotate %16 by %c2_i32 dim 0 : vector<16x128xf32>, i32 -> vector<16x128xf32>
    %c2_i32_2 = arith.constant 2 : i32
    %18 = vector.broadcast %c2_i32_2 : i32 to vector<16x128xi32>
    %19 = arith.cmpi sge, %1, %18 : vector<16x128xi32>
    %cst_3 = arith.constant 0xFF800000 : f32
    %20 = vector.broadcast %cst_3 : f32 to vector<16x128xf32>
    %21 = arith.select %19, %17, %20 : vector<16x128xi1>, vector<16x128xf32>
    %22 = arith.maximumf %16, %21 : vector<16x128xf32>
    %23 = arith.minimumf %16, %21 : vector<16x128xf32>
    %24 = arith.subf %23, %22 : vector<16x128xf32>
    %25 = math.exp %24 : vector<16x128xf32>
    %26 = math.log1p %25 : vector<16x128xf32>
    %27 = arith.addf %22, %26 : vector<16x128xf32>
    %c4_i32 = arith.constant 4 : i32
    %28 = tpu.dynamic_rotate %27 by %c4_i32 dim 0 : vector<16x128xf32>, i32 -> vector<16x128xf32>
    %c4_i32_4 = arith.constant 4 : i32
    %29 = vector.broadcast %c4_i32_4 : i32 to vector<16x128xi32>
    %30 = arith.cmpi sge, %1, %29 : vector<16x128xi32>
    %cst_5 = arith.constant 0xFF800000 : f32
    %31 = vector.broadcast %cst_5 : f32 to vector<16x128xf32>
    %32 = arith.select %30, %28, %31 : vector<16x128xi1>, vector<16x128xf32>
    %33 = arith.maximumf %27, %32 : vector<16x128xf32>
    %34 = arith.minimumf %27, %32 : vector<16x128xf32>
    %35 = arith.subf %34, %33 : vector<16x128xf32>
    %36 = math.exp %35 : vector<16x128xf32>
    %37 = math.log1p %36 : vector<16x128xf32>
    %38 = arith.addf %33, %37 : vector<16x128xf32>
    %c8_i32 = arith.constant 8 : i32
    %39 = tpu.dynamic_rotate %38 by %c8_i32 dim 0 : vector<16x128xf32>, i32 -> vector<16x128xf32>
    %c8_i32_6 = arith.constant 8 : i32
    %40 = vector.broadcast %c8_i32_6 : i32 to vector<16x128xi32>
    %41 = arith.cmpi sge, %1, %40 : vector<16x128xi32>
    %cst_7 = arith.constant 0xFF800000 : f32
    %42 = vector.broadcast %cst_7 : f32 to vector<16x128xf32>
    %43 = arith.select %41, %39, %42 : vector<16x128xi1>, vector<16x128xf32>
    %44 = arith.maximumf %38, %43 : vector<16x128xf32>
    %45 = arith.minimumf %38, %43 : vector<16x128xf32>
    %46 = arith.subf %45, %44 : vector<16x128xf32>
    %47 = math.exp %46 : vector<16x128xf32>
    %48 = math.log1p %47 : vector<16x128xf32>
    %49 = arith.addf %44, %48 : vector<16x128xf32>
    %c16_i32 = arith.constant 16 : i32
    %50 = vector.broadcast %c16_i32 : i32 to vector<16x128xi32>
    %51 = arith.cmpi slt, %1, %50 : vector<16x128xi32>
    %c8_i32_8 = arith.constant 8 : i32
    %52 = vector.broadcast %c8_i32_8 : i32 to vector<16x128xi32>
    %53 = arith.cmpi slt, %5, %52 : vector<16x128xi32>
    %54 = arith.andi %51, %53 : vector<16x128xi1>
    %55 = arith.subf %49, %0 : vector<16x128xf32>
    %cst_9 = arith.constant 0.000000e+00 : f32
    %56 = vector.broadcast %cst_9 : f32 to vector<16x128xf32>
    %57 = arith.select %54, %55, %56 : vector<16x128xi1>, vector<16x128xf32>
    %58 = vector.shape_cast %57 : vector<16x128xf32> to vector<1x16x128xf32>
    %cst_10 = arith.constant dense<0.000000e+00> : vector<1xf32>
    %59 = vector.multi_reduction <add>, %58, %cst_10 [1, 2] : vector<1x16x128xf32> to vector<1xf32>
    %60 = vector.shape_cast %59 : vector<1xf32> to vector<1x1x1xf32>
    %61 = vector.extract %60[0, 0, 0] : f32 from vector<1x1x1xf32>
    %62 = vector.broadcast %61 : f32 to vector<1x8x128xf32>
    %c0_11 = arith.constant 0 : index
    %c0_12 = arith.constant 0 : index
    %c0_13 = arith.constant 0 : index
    %63 = vector.load %arg2[%c0_11, %c0_12, %c0_13] : memref<1x8x128xf32, #tpu.memory_space<vmem>>, vector<1x8x128xf32>
    tpu.vector_store %arg2[%c0_11, %c0_12, %c0_13], %62 {strides = array<i32>} : memref<1x8x128xf32, #tpu.memory_space<vmem>>, vector<1x8x128xf32>,
    return
  }
  func.func @transform_0(%arg0: i32) -> (i32, i32) {
    %c0_i32 = arith.constant 0 : i32
    %c0_i32_0 = arith.constant 0 : i32
    return %c0_i32, %arg0 : i32, i32
  }
  func.func @transform_1(%arg0: i32) -> (i32, i32, i32) {
    %c0_i32 = arith.constant 0 : i32
    %c0_i32_0 = arith.constant 0 : i32
    %c0_i32_1 = arith.constant 0 : i32
    return %arg0, %c0_i32, %c0_i32_0 : i32, i32, i32
  }
}

</mosaic_0001>

<llo_original>
// kernel: tpu_custom_call.1
$region0: #{tpu_custom_call.1}
  #allocation0 [shape = 'u32[]', space=smem, size = 0x4, offset = 0x4, fixed_abs, tag = 'smem constant byte address 0x4 - core index']
  #allocation1 [shape = 'u32[144,128]{1,0:T(1,128)}', space=vmem, size = 0x12000, scoped, tag = 'internal scratch']
  %s0 = inlined_call_operand.hbm [shape: f32[16,128], index: 0, kind: input, shape index: {}]
  %s1 = inlined_call_operand.hbm [shape: f32[1,8,128], index: 1, kind: output, shape index: {}]
  %s2 = sld [smem:[#allocation0]]
  $region18: #{tpu_custom_call.1} parent=0
    _
  %s4 = ssub.s32 1, %s2
  %s5 = scalar_select 0, %s4, %s2
  $region1: #{tpu_custom_call.1} parent=0
    #allocation2 [shape = 'u8[8192]{0}', space=vmem, size = 0x2000, scoped, tag = 'input window, operand 0, single buffered']
    #allocation3 [shape = 's32[1]{0}', space=sflag, size = 0x4, scoped, tag = 'scoped memory for tpu_custom_call.1']
    #allocation4 [shape = 's32[1]{0}', space=sflag, size = 0x4, scoped, tag = 'scoped memory for tpu_custom_call.1']
    #allocation5 [shape = 'u8[4096]{0}', space=vmem, size = 0x1000, scoped, tag = 'output window, operand 0, single buffered']
    %6 = vsyncpa [#allocation3], 0
    %7 = vsyncpa [#allocation4], 0
    // Predicated region
    $region2: #{tpu_custom_call.1} parent=1 // pred_check
      _
    $region3: #{tpu_custom_call.1} parent=1 // pred_check_branch
      %9 = sbr.rel (0) target = $region5
    $region4: #{tpu_custom_call.1} parent=1 // pred_region
      %s11 = ssub.s32 256, 256
      %12 = vsyncadd [#allocation3], %s11
      %s13 = sshll.u32 [#allocation2], 4
      %s14 = int_to_ptr.vmem [resolvable:$true] %s13
      %19 = dma.hbm_to_vmem [thread:$0]  %s0, 256, %s14, [#allocation3], 128, 128, 8
    $region5: #{tpu_custom_call.1} parent=1 // pred_fallthru
      _
    // Predicated region
    $region6: #{tpu_custom_call.1} parent=1 // pred_check
      _
    $region7: #{tpu_custom_call.1} parent=1 // pred_check_branch
      %21 = sbr.rel (0) target = $region9
    $region8: #{tpu_custom_call.1} parent=1 // pred_region
      %22 = dma.done [#allocation3], 256
    $region9: #{tpu_custom_call.1} parent=1 // pred_fallthru
      _
    %v23 = vld [vmem:[#allocation2] sm:$0xff]
    %v24 = vld [vmem:[#allocation2 + $0x8] sm:$0xff]
    %v25 = vlaneseq
    %v26 = vshrl.u32 %v25, 7
    %v27 = vadd.s32 %v26, 8
    %s28 = smul.u32 0, 128
    %v29 = vlaneseq
    %v30 = vand.u32 %v29, 127
    %v31 = vstv %s28
    %v32 = vadd.s32 %v31, %v30
    %v33 = vrot.slane %v23, 7
    %v34 = vrot.slane %v24, 7
    %vm35 = vcmp.lt.s32.totalorder %v26, 1
    %v36 = vsel %vm35, %v33, %v34
    %v37 = vsel %vm35, %v34, %v33
    %vm38 = vcmp.ge.s32.totalorder %v26, 1
    %vm39 = vcmp.ge.s32.totalorder %v27, 1
    %v40 = vsel %vm38, %v37, -inf
    %v41 = vsel %vm39, %v36, -inf
    %v42 = vmax.f32 %v23, %v40
    %v43 = vmax.f32 %v24, %v41
    %v44 = vmin.f32 %v23, %v40
    %v45 = vmin.f32 %v24, %v41
    %v46 = vsub.f32 %v44, %v42
    %v47 = vsub.f32 %v45, %v43
    %v48 = vmul.f32 %v46, 1.442695
    %v49 = vpow.pop %v48
    %v50 = vmul.f32 %v47, 1.442695
    %v51 = vpow.pop %v50
    %v52 = vadd.f32 %v49, 1.0
    %v53 = vlog2.pop %v52
    %v54 = vmul.f32 %v53, 0.6931472
    %v55 = vmul.f32 -0.5, %v49
    %v56 = vadd.f32 %v55, 1.0
    %v57 = vmul.f32 %v56, %v49
    %v58 = vand.u32 2147483647, %v49
    %vm59 = vcmp.lt.f32.partialorder %v58, 0.0004427343
    %v60 = vsel %vm59, %v57, %v54
    %v61 = vadd.f32 %v51, 1.0
    %v62 = vlog2.pop %v61
    %v63 = vmul.f32 %v62, 0.6931472
    %v64 = vmul.f32 -0.5, %v51
    %v65 = vadd.f32 %v64, 1.0
    %v66 = vmul.f32 %v65, %v51
    %v67 = vand.u32 2147483647, %v51
    %vm68 = vcmp.lt.f32.partialorder %v67, 0.0004427343
    %v69 = vsel %vm68, %v66, %v63
    %v70 = vadd.f32 %v42, %v60
    %v71 = vadd.f32 %v43, %v69
    %v72 = vrot.slane %v70, 6
    %v73 = vrot.slane %v71, 6
    %vm74 = vcmp.lt.s32.totalorder %v26, 2
    %v75 = vsel %vm74, %v72, %v73
    %v76 = vsel %vm74, %v73, %v72
    %vm77 = vcmp.ge.s32.totalorder %v26, 2
    %vm78 = vcmp.ge.s32.totalorder %v27, 2
    %v79 = vsel %vm77, %v76, -inf
    %v80 = vsel %vm78, %v75, -inf
    %v81 = vmax.f32 %v70, %v79
    %v82 = vmax.f32 %v71, %v80
    %v83 = vmin.f32 %v70, %v79
    %v84 = vmin.f32 %v71, %v80
    %v85 = vsub.f32 %v83, %v81
    %v86 = vsub.f32 %v84, %v82
    %v87 = vmul.f32 %v85, 1.442695
    %v88 = vpow.pop %v87
    %v89 = vmul.f32 %v86, 1.442695
    %v90 = vpow.pop %v89
    %v91 = vadd.f32 %v88, 1.0
    %v92 = vlog2.pop %v91
    %v93 = vmul.f32 %v92, 0.6931472
    %v94 = vmul.f32 -0.5, %v88
    %v95 = vadd.f32 %v94, 1.0
    %v96 = vmul.f32 %v95, %v88
    %v97 = vand.u32 2147483647, %v88
    %vm98 = vcmp.lt.f32.partialorder %v97, 0.0004427343
    %v99 = vsel %vm98, %v96, %v93
    %v100 = vadd.f32 %v90, 1.0
    %v101 = vlog2.pop %v100
    %v102 = vmul.f32 %v101, 0.6931472
    %v103 = vmul.f32 -0.5, %v90
    %v104 = vadd.f32 %v103, 1.0
    %v105 = vmul.f32 %v104, %v90
    %v106 = vand.u32 2147483647, %v90
    %vm107 = vcmp.lt.f32.partialorder %v106, 0.0004427343
    %v108 = vsel %vm107, %v105, %v102
    %v109 = vadd.f32 %v81, %v99
    %v110 = vadd.f32 %v82, %v108
    %v111 = vrot.slane %v109, 4
    %v112 = vrot.slane %v110, 4
    %vm113 = vcmp.lt.s32.totalorder %v26, 4
    %v114 = vsel %vm113, %v111, %v112
    %v115 = vsel %vm113, %v112, %v111
    %vm116 = vcmp.ge.s32.totalorder %v26, 4
    %vm117 = vcmp.ge.s32.totalorder %v27, 4
    %v118 = vsel %vm116, %v115, -inf
    %v119 = vsel %vm117, %v114, -inf
    %v120 = vmax.f32 %v109, %v118
    %v121 = vmax.f32 %v110, %v119
    %v122 = vmin.f32 %v109, %v118
    %v123 = vmin.f32 %v110, %v119
    %v124 = vsub.f32 %v122, %v120
    %v125 = vsub.f32 %v123, %v121
    %v126 = vmul.f32 %v124, 1.442695
    %v127 = vpow.pop %v126
    %v128 = vmul.f32 %v125, 1.442695
    %v129 = vpow.pop %v128
    %v130 = vadd.f32 %v127, 1.0
    %v131 = vlog2.pop %v130
    %v132 = vmul.f32 %v131, 0.6931472
    %v133 = vmul.f32 -0.5, %v127
    %v134 = vadd.f32 %v133, 1.0
    %v135 = vmul.f32 %v134, %v127
    %v136 = vand.u32 2147483647, %v127
    %vm137 = vcmp.lt.f32.partialorder %v136, 0.0004427343
    %v138 = vsel %vm137, %v135, %v132
    %v139 = vadd.f32 %v129, 1.0
    %v140 = vlog2.pop %v139
    %v141 = vmul.f32 %v140, 0.6931472
    %v142 = vmul.f32 -0.5, %v129
    %v143 = vadd.f32 %v142, 1.0
    %v144 = vmul.f32 %v143, %v129
    %v145 = vand.u32 2147483647, %v129
    %vm146 = vcmp.lt.f32.partialorder %v145, 0.0004427343
    %v147 = vsel %vm146, %v144, %v141
    %v148 = vadd.f32 %v120, %v138
    %v149 = vadd.f32 %v121, %v147
    %vm150 = vcmp.ge.s32.totalorder %v26, 8
    %vm151 = vcmp.ge.s32.totalorder %v27, 8
    %v152 = vsel %vm150, %v149, -inf
    %v153 = vsel %vm151, %v148, -inf
    %v154 = vmax.f32 %v148, %v152
    %v155 = vmax.f32 %v149, %v153
    %v156 = vmin.f32 %v148, %v152
    %v157 = vmin.f32 %v149, %v153
    %v158 = vsub.f32 %v156, %v154
    %v159 = vsub.f32 %v157, %v155
    %v160 = vmul.f32 %v158, 1.442695
    %v161 = vpow.pop %v160
    %v162 = vmul.f32 %v159, 1.442695
    %v163 = vpow.pop %v162
    %v164 = vadd.f32 %v161, 1.0
    %v165 = vlog2.pop %v164
    %v166 = vmul.f32 %v165, 0.6931472
    %v167 = vmul.f32 -0.5, %v161
    %v168 = vadd.f32 %v167, 1.0
    %v169 = vmul.f32 %v168, %v161
    %v170 = vand.u32 2147483647, %v161
    %vm171 = vcmp.lt.f32.partialorder %v170, 0.0004427343
    %v172 = vsel %vm171, %v169, %v166
    %v173 = vadd.f32 %v163, 1.0
    %v174 = vlog2.pop %v173
    %v175 = vmul.f32 %v174, 0.6931472
    %v176 = vmul.f32 -0.5, %v163
    %v177 = vadd.f32 %v176, 1.0
    %v178 = vmul.f32 %v177, %v163
    %v179 = vand.u32 2147483647, %v163
    %vm180 = vcmp.lt.f32.partialorder %v179, 0.0004427343
    %v181 = vsel %vm180, %v178, %v175
    %v182 = vadd.f32 %v154, %v172
    %v183 = vadd.f32 %v155, %v181
    %vm184 = vcmp.lt.s32.totalorder %v26, 16
    %vm185 = vcmp.lt.s32.totalorder %v27, 16
    %vm186 = vcmp.lt.s32.totalorder %v32, 8
    %vm187 = vmand %vm184, %vm186
    %vm188 = vmand %vm185, %vm186
    %v189 = vsub.f32 %v182, %v23
    %v190 = vsub.f32 %v183, %v24
    %v191 = vsel %vm187, %v189, 0.0
    %v192 = vsel %vm188, %v190, 0.0
    %v193 = vadd.f32 %v191, %v192
    %194 = vadd.xlane.f32.xlu0 %v193
    %v195 = vpop.xlane.xlu0 %194
    %v196 = vrot.slane %v195, 4
    %v197 = vadd.f32 %v195, %v196
    %v198 = vrot.slane %v197, 2
    %v199 = vadd.f32 %v197, %v198
    %v200 = vrot.slane %v199, 1
    %v201 = vadd.f32 %v199, %v200
    %s202 = vtos %v201
    %v203 = vstv %s202
    %204 = vst [vmem:[#allocation5] sm:$0xff] %v203
    // Predicated region
    $region10: #{tpu_custom_call.1} parent=1 // pred_check
      _
    $region11: #{tpu_custom_call.1} parent=1 // pred_check_branch
      %206 = sbr.rel (0) target = $region13
    $region12: #{tpu_custom_call.1} parent=1 // pred_region
      %s208 = ssub.s32 128, 128
      %209 = vsyncadd [#allocation4], %s208
      %s211 = sshll.u32 [#allocation5], 4
      %s212 = int_to_ptr.vmem [resolvable:$true] %s211
      %214 = dma.vmem_to_hbm [thread:$0]  %s212, 128, %s1, [#allocation4]
    $region13: #{tpu_custom_call.1} parent=1 // pred_fallthru
      _
    // Predicated region
    $region14: #{tpu_custom_call.1} parent=1 // pred_check
      _
    $region15: #{tpu_custom_call.1} parent=1 // pred_check_branch
      %216 = sbr.rel (0) target = $region17
    $region16: #{tpu_custom_call.1} parent=1 // pred_region
      %217 = dma.done [#allocation4], 128
    $region17: #{tpu_custom_call.1} parent=1 // pred_fallthru
      _
    %218 = vsyncpa [#allocation3], 1
    %219 = vsyncpa [#allocation4], 1

</llo_original>
